<compile_context>
chip_gen: v7x
topology: tpu7x:2x2x1
jax: 0.10.0
libtpu: 0.0.40
codegen_flags: <defaults>
</compile_context>

<pallas_src>
import functools

import numpy as np
import jax
import jax.numpy as jnp
from jax import lax
from jax.experimental import pallas as pl
from jax.experimental.pallas import tpu as pltpu

LN_EPS = 1e-5


def _layer_norm(x, gamma, beta):
    mean = jnp.mean(x, axis=-1, keepdims=True)
    var = jnp.mean((x - mean) ** 2, axis=-1, keepdims=True)
    return (x - mean) * lax.rsqrt(var + LN_EPS) * gamma + beta


def _round_up(x, m):
    return ((x + m - 1) // m) * m


def _plan_tiles(n, target_i, target_j):
    """Pad n and pick (ti, tj) tiles that divide the padded size and satisfy (8,128) rules."""
    if n <= max(target_i, target_j, 8):
        t = _round_up(max(n, 1), 8)
        return t, t, t
    n_pad = _round_up(n, 128)
    ti = max(8, (min(target_i, n_pad) // 8) * 8)
    while n_pad % ti:
        ti -= 8
    tj = max(128, (min(target_j, n_pad) // 128) * 128)
    while n_pad % tj:
        tj -= 128
    return n_pad, ti, tj


def _squared_bins(min_bin, max_bin, nb):
    """Squared lower bin boundaries as PYTHON floats (scalar constants in the kernel)."""
    step = (max_bin - min_bin) / (nb - 1)
    bins = np.float32(min_bin) + np.arange(nb, dtype=np.float32) * np.float32(step)
    return tuple(float(v) for v in (bins * bins))


# ---------------------------------------------------------------------------
# Kernel 1: fused projections of target_feat (tiled over B and N)
#   [T1, tf_dim] @ [tf_dim, 2*c_z + c_m]  ->  tf_emb_i, tf_emb_j, LayerNorm(tf_m)
# ---------------------------------------------------------------------------
def _single_kernel(tf_ref, w_ref, b_ref, g_m_ref, be_m_ref,
                   zi_ref, zj_ref, m_ref, *, c_z):
    y = jnp.dot(tf_ref[0], w_ref[...], preferred_element_type=jnp.float32) + b_ref[...]
    zi_ref[0] = y[:, :c_z].astype(zi_ref.dtype)
    zj_ref[0] = y[:, c_z:2 * c_z].astype(zj_ref.dtype)
    m = y[:, 2 * c_z:]
    m_ref[0] = _layer_norm(m, g_m_ref[...], be_m_ref[...]).astype(m_ref.dtype)


# ---------------------------------------------------------------------------
# Kernel 2: pair embedding, one (TI, TJ) tile of the N x N plane per grid step
# ---------------------------------------------------------------------------
def _pair_kernel(zi_ref, zj_ref, row_ref, col_ref, bonds_ref,
                 w_a_ref, w_b_ref, g_z_ref, be_z_ref, out_ref,
                 *, relpos_k, prot_no_bins, lig_no_bins, prot_sq_bins, lig_sq_bins):
    ti, tj, c_z = out_ref.shape[1], out_ref.shape[2], out_ref.shape[3]
    bond_dim = bonds_ref.shape[1]
    nb_rel = 2 * relpos_k + 1
    f32 = jnp.float32

    # packed per-token scalars: 0 prot_mask, 1 lig_mask, 2 residue_idx, 3 disto_mask, 4:7 xyz
    row = row_ref[0]                                     # [TI, 7]
    col = col_ref[0]                                     # [7, TJ]
    pm_i, lm_i, ri_i, pdm_i = row[:, 0:1], row[:, 1:2], row[:, 2:3], row[:, 3:4]
    pos_i = row[:, 4:7]                                  # [TI, 3]
    pm_j, lm_j, ri_j, pdm_j = col[0:1, :], col[1:2, :], col[2:3, :], col[3:4, :]
    pos_j = col[4:7, :]                                  # [3, TJ]

    pair_prot = pm_i * pm_j                              # [TI, TJ], lane-dense
    pair_lig = lm_i * lm_j

    # relpos index: residue_index is integer valued, so argmin|d-b| one-hot == clip(d)+k.
    rel_idx = (jnp.clip(ri_i - ri_j, -float(relpos_k), float(relpos_k))
               + float(relpos_k)).astype(jnp.int32)      # [TI, TJ]

    bonds = bonds_ref[0]                                 # [bond_dim, TI, TJ] (channel-major)

    # ---- group A (pre layer-norm), K-major feature rows, lane-dense planes ----
    # rows: nb_rel masked relpos one-hot | b_rel col | b_bond col | bond_dim masked channels
    rows_a = [pair_prot * (rel_idx == kk).astype(f32) for kk in range(nb_rel)]
    rows_a.append(pair_prot)                             # bias column for b_rel
    rows_a.append(pair_lig)                              # bias column for b_bond
    for d in range(bond_dim):
        rows_a.append(pair_lig * bonds[d])
    k_a = len(rows_a)
    feat_a = jnp.stack(rows_a, axis=0).reshape(k_a, ti * tj)          # [k_a, TI*TJ]
    emb_a = lax.dot_general(feat_a, w_a_ref[...], (((0,), (0,)), ((), ())),
                            preferred_element_type=f32).reshape(ti, tj, c_z)

    pair = zi_ref[0][:, None, :] + zj_ref[0][None, :, :] + emb_a

    # ---- layer norm over c_z (rsqrt -> EUP) ----
    pair = _layer_norm(pair, g_z_ref[...], be_z_ref[...])

    # ---- squared pairwise distances (same op order as the reference) ----
    dsq = jnp.zeros((ti, tj), f32)
    for c in range(3):
        dc = pos_i[:, c:c + 1] - pos_j[c:c + 1, :]
        dsq = dsq + dc * dc

    def bin_index(sq_bins):
        # unrolled scalar-constant compares; -1 => matches no feature row
        cnt = jnp.zeros((ti, tj), jnp.int32)
        for sb in sq_bins:                               # python floats -> scalar constants
            cnt = cnt + (dsq > sb).astype(jnp.int32)
        return cnt - 1

    prot_idx = bin_index(prot_sq_bins)
    lig_idx = bin_index(lig_sq_bins)

    # protein "unknown position" handling
    m_i = (pdm_i == 1.0).astype(f32)
    m_j = (pdm_j == 1.0).astype(f32)
    combined = jnp.maximum(m_i, m_j)                     # == clamp(m_i + m_j, max=1)
    prot_scale = pair_prot * (1.0 - combined)
    prot_unk = pair_prot * combined

    # ---- group B (post layer-norm), K-major feature rows ----
    # rows: prot_no_bins masked prot one-hot | unknown bin | b_prot col |
    #       lig_no_bins masked lig one-hot | b_lig col
    rows_b = [prot_scale * (prot_idx == kk).astype(f32) for kk in range(prot_no_bins)]
    rows_b.append(prot_unk)
    rows_b.append(pair_prot)                             # bias column for b_prot
    rows_b += [pair_lig * (lig_idx == kk).astype(f32) for kk in range(lig_no_bins)]
    rows_b.append(pair_lig)                              # bias column for b_lig
    k_b = len(rows_b)
    feat_b = jnp.stack(rows_b, axis=0).reshape(k_b, ti * tj)          # [k_b, TI*TJ]
    emb_b = lax.dot_general(feat_b, w_b_ref[...], (((0,), (0,)), ((), ())),
                            preferred_element_type=f32).reshape(ti, tj, c_z)

    out_ref[0] = (pair + emb_b).astype(out_ref.dtype)


# ---------------------------------------------------------------------------
# Wrapper
# ---------------------------------------------------------------------------
def structure_input_embedder(params, cfg, token_mask, protein_mask, ligand_mask,
                             target_feat, ligand_bonds_feat, input_positions,
                             protein_residue_index, protein_distogram_mask,
                             *, tile_i=128, tile_j=128, vmem_limit_mb=48,
                             out_dtype=jnp.float32):
    # v7x: keep tile_i<=128 / vmem_limit<=48 MiB.  v6e/v5e: tiles up to 256 and 64-96 MiB are
    # fine.  v5e: pass out_dtype=jnp.bfloat16 to halve the dominant [B,N,N,c_z] writeback.
    del token_mask  # unused by the forward pass (matches the torch module)
    B, N, tf_dim = target_feat.shape
    bond_dim = ligand_bonds_feat.shape[-1]
    c_m = params["w_tf_m"].shape[1]
    c_z = params["w_tf_z_i"].shape[1]
    f32 = jnp.float32

    n_pad, ti, tj = _plan_tiles(N, tile_i, tile_j)
    pad_n = n_pad - N

    target_feat = target_feat.astype(f32)
    # packed per-token scalars -> one lane-dense row view + one transposed column view
    row_feats = jnp.concatenate(
        [protein_mask.astype(f32)[..., None],
         ligand_mask.astype(f32)[..., None],
         protein_residue_index.astype(f32)[..., None],
         protein_distogram_mask.astype(f32)[..., None],
         input_positions.astype(f32)], axis=-1)                       # [B, N, 7]
    bonds = ligand_bonds_feat.astype(f32)

    if pad_n:
        target_feat = jnp.pad(target_feat, ((0, 0), (0, pad_n), (0, 0)))
        row_feats = jnp.pad(row_feats, ((0, 0), (0, pad_n), (0, 0)))
        bonds = jnp.pad(bonds, ((0, 0), (0, pad_n), (0, pad_n), (0, 0)))

    col_feats = jnp.swapaxes(row_feats, -1, -2)                       # [B, 7, n_pad]
    n_tok = row_feats.shape[-1]

    # TODO(synk): have the producer emit channel-major bonds directly; this transpose is an
    # extra HBM round trip of the largest input.
    bonds_t = jnp.moveaxis(bonds, -1, 1)                              # [B, bond_dim, n_pad, n_pad]

    # fused weight / bias packing (done once in the wrapper)
    w_single = jnp.concatenate([params["w_tf_z_i"], params["w_tf_z_j"], params["w_tf_m"]], axis=1)
    b_single = jnp.concatenate([params["b_tf_z_i"], params["b_tf_z_j"], params["b_tf_m"]], axis=1)
    # group A rows: relpos one-hot | b_rel | b_bond | bond channels
    w_a = jnp.concatenate([params["w_rel"], params["b_rel"],
                           params["b_bond"], params["w_bond"]], axis=0)            # [k_a, c_z]
    # group B rows: prot bins (+ unknown) | b_prot | lig bins | b_lig
    w_b = jnp.concatenate([params["w_prot"], params["b_prot"],
                           params["w_lig"], params["b_lig"]], axis=0)              # [k_b, c_z]
    k_a, k_b = w_a.shape[0], w_b.shape[0]

    # ----- kernel 1: fused projections + layer-normed single embedding -----
    c_tot = 2 * c_z + c_m
    tf_z_i, tf_z_j, tf_m = pl.pallas_call(
        functools.partial(_single_kernel, c_z=c_z),
        out_shape=(jax.ShapeDtypeStruct((B, n_pad, c_z), f32),
                   jax.ShapeDtypeStruct((B, n_pad, c_z), f32),
                   jax.ShapeDtypeStruct((B, n_pad, c_m), out_dtype)),
        grid=(B, n_pad // ti),
        in_specs=[
            pl.BlockSpec((1, ti, tf_dim), lambda b, n: (b, n, 0)),
            pl.BlockSpec((tf_dim, c_tot), lambda b, n: (0, 0)),
            pl.BlockSpec((1, c_tot), lambda b, n: (0, 0)),
            pl.BlockSpec((1, c_m), lambda b, n: (0, 0)),
            pl.BlockSpec((1, c_m), lambda b, n: (0, 0)),
        ],
        out_specs=[
            pl.BlockSpec((1, ti, c_z), lambda b, n: (b, n, 0)),
            pl.BlockSpec((1, ti, c_z), lambda b, n: (b, n, 0)),
            pl.BlockSpec((1, ti, c_m), lambda b, n: (b, n, 0)),
        ],
        compiler_params=pltpu.CompilerParams(
            dimension_semantics=("parallel", "parallel")),
    )(target_feat, w_single, b_single, params["g_m"], params["be_m"])

    # ----- kernel 2: pair embedding, tiled over the N x N plane -----
    pair_fn = functools.partial(
        _pair_kernel,
        relpos_k=cfg["relpos_k"],
        prot_no_bins=cfg["prot_no_bins"],
        lig_no_bins=cfg["lig_no_bins"],
        prot_sq_bins=_squared_bins(cfg["prot_min_bin"], cfg["prot_max_bin"], cfg["prot_no_bins"]),
        lig_sq_bins=_squared_bins(cfg["lig_min_bin"], cfg["lig_max_bin"], cfg["lig_no_bins"]))

    pair_emb = pl.pallas_call(
        pair_fn,
        out_shape=jax.ShapeDtypeStruct((B, n_pad, n_pad, c_z), out_dtype),
        grid=(B, n_pad // ti, n_pad // tj),
        in_specs=[
            pl.BlockSpec((1, ti, c_z), lambda b, i, j: (b, i, 0)),             # tf_emb_i (rows)
            pl.BlockSpec((1, tj, c_z), lambda b, i, j: (b, j, 0)),             # tf_emb_j (cols)
            pl.BlockSpec((1, ti, n_tok), lambda b, i, j: (b, i, 0)),           # packed row scalars
            pl.BlockSpec((1, n_tok, tj), lambda b, i, j: (b, 0, j)),           # packed col scalars
            pl.BlockSpec((1, bond_dim, ti, tj), lambda b, i, j: (b, 0, i, j)),  # bonds (chan-major)
            pl.BlockSpec((k_a, c_z), lambda b, i, j: (0, 0)),                  # fused pre-LN weights
            pl.BlockSpec((k_b, c_z), lambda b, i, j: (0, 0)),                  # fused post-LN weights
            pl.BlockSpec((1, c_z), lambda b, i, j: (0, 0)),                    # layer-norm gamma
            pl.BlockSpec((1, c_z), lambda b, i, j: (0, 0)),                    # layer-norm beta
        ],
        out_specs=pl.BlockSpec((1, ti, tj, c_z), lambda b, i, j: (b, i, j, 0)),
        compiler_params=pltpu.CompilerParams(
            dimension_semantics=("parallel", "parallel", "parallel"),
            vmem_limit_bytes=vmem_limit_mb * 1024 * 1024),
    )(tf_z_i, tf_z_j, row_feats, col_feats, bonds_t,
      w_a, w_b, params["g_z"], params["be_z"])

    if pad_n:
        tf_m = tf_m[:, :N]
        pair_emb = pair_emb[:, :N, :N]
    return tf_m, pair_emb


# ---------------------------------------------------------------------------
# Pure-JAX reference mirroring the torch module (for correctness check)
# ---------------------------------------------------------------------------
def reference_forward(params, cfg, token_mask, protein_mask, ligand_mask,
                      target_feat, ligand_bonds_feat, input_positions,
                      protein_residue_index, protein_distogram_mask):
    del token_mask
    hp = jax.lax.Precision.HIGHEST

    def linear(x, w, b):
        return jnp.einsum("...i,io->...o", x, w, precision=hp) + b[0]

    def ln(x, g, be):
        mean = jnp.mean(x, -1, keepdims=True)
        var = jnp.mean((x - mean) ** 2, -1, keepdims=True)
        return (x - mean) / jnp.sqrt(var + LN_EPS) * g[0] + be[0]

    pair_prot = protein_mask[..., None] * protein_mask[..., None, :]
    pair_lig = ligand_mask[..., None] * ligand_mask[..., None, :]

    tf_m = ln(linear(target_feat, params["w_tf_m"], params["b_tf_m"]),
              params["g_m"], params["be_m"])
    ti = linear(target_feat, params["w_tf_z_i"], params["b_tf_z_i"])
    tj = linear(target_feat, params["w_tf_z_j"], params["b_tf_z_j"])
    pair = ti[..., :, None, :] + tj[..., None, :, :]

    k = cfg["relpos_k"]
    ri = protein_residue_index.astype(jnp.float32)
    d = ri[..., None] - ri[..., None, :]
    boundaries = jnp.arange(-k, k + 1, dtype=jnp.float32)
    idx = jnp.argmin(jnp.abs(d[..., None] - boundaries), axis=-1)
    oh = jax.nn.one_hot(idx, 2 * k + 1, dtype=jnp.float32)
    pair = pair + pair_prot[..., None] * linear(oh, params["w_rel"], params["b_rel"])

    pair = pair + pair_lig[..., None] * linear(ligand_bonds_feat, params["w_bond"], params["b_bond"])
    pair = ln(pair, params["g_z"], params["be_z"])

    def binned(x, mn, mx, nb, w, b, pdm):
        step = (mx - mn) / (nb - 1)
        bins = mn + jnp.arange(nb, dtype=jnp.float32) * step
        sq = bins ** 2
        upper = jnp.concatenate([sq[1:], jnp.array([cfg["inf"]], jnp.float32)])
        dd = jnp.sum((x[..., None, :] - x[..., None, :, :]) ** 2, axis=-1, keepdims=True)
        dd = (dd > sq).astype(jnp.float32) * (dd < upper).astype(jnp.float32)
        if pdm is not None:
            exp = jnp.concatenate([dd, jnp.zeros(dd.shape[:-1] + (1,), jnp.float32)], -1)
            ipm = (pdm == 1).astype(jnp.float32)
            comb = jnp.minimum(ipm[..., :, None] + ipm[..., None, :], 1.0)
            main = exp[..., :-1] * (1.0 - comb)[..., None]
            last = exp[..., -1:] + comb[..., None]
            dd = jnp.concatenate([main, last], -1)
        return linear(dd, w, b)

    prot_e = binned(input_positions, cfg["prot_min_bin"], cfg["prot_max_bin"],
                    cfg["prot_no_bins"], params["w_prot"], params["b_prot"],
                    protein_distogram_mask)
    pair = pair + prot_e * pair_prot[..., None]
    lig_e = binned(input_positions, cfg["lig_min_bin"], cfg["lig_max_bin"],
                   cfg["lig_no_bins"], params["w_lig"], params["b_lig"], None)
    pair = pair + lig_e * pair_lig[..., None]
    return tf_m, pair


# ---------------------------------------------------------------------------
# Main
# ---------------------------------------------------------------------------
if __name__ == "__main__":
    B, N = 2, 16
    protein_tf_dim, ligand_tf_dim, additional_tf_dim = 21, 8, 3
    tf_dim = protein_tf_dim + ligand_tf_dim + additional_tf_dim       # 32
    bond_dim = 6
    c_z, c_m = 32, 32
    cfg = dict(relpos_k=4,
               prot_min_bin=3.25, prot_max_bin=20.75, prot_no_bins=15,
               lig_min_bin=1.0, lig_max_bin=10.0, lig_no_bins=12,
               inf=1e8)
    no_rel_bins = 2 * cfg["relpos_k"] + 1

    key = jax.random.PRNGKey(0)
    keys = iter(jax.random.split(key, 32))

    def init_linear(din, dout):
        w = 0.1 * jax.random.normal(next(keys), (din, dout), jnp.float32)
        b = 0.1 * jax.random.normal(next(keys), (1, dout), jnp.float32)
        return w, b

    params = {}
    params["w_tf_m"], params["b_tf_m"] = init_linear(tf_dim, c_m)
    params["w_tf_z_i"], params["b_tf_z_i"] = init_linear(tf_dim, c_z)
    params["w_tf_z_j"], params["b_tf_z_j"] = init_linear(tf_dim, c_z)
    params["w_bond"], params["b_bond"] = init_linear(bond_dim, c_z)
    params["w_rel"], params["b_rel"] = init_linear(no_rel_bins, c_z)
    params["w_prot"], params["b_prot"] = init_linear(cfg["prot_no_bins"] + 1, c_z)
    params["w_lig"], params["b_lig"] = init_linear(cfg["lig_no_bins"], c_z)
    params["g_m"] = 1.0 + 0.05 * jax.random.normal(next(keys), (1, c_m), jnp.float32)
    params["be_m"] = 0.05 * jax.random.normal(next(keys), (1, c_m), jnp.float32)
    params["g_z"] = 1.0 + 0.05 * jax.random.normal(next(keys), (1, c_z), jnp.float32)
    params["be_z"] = 0.05 * jax.random.normal(next(keys), (1, c_z), jnp.float32)

    # inputs
    target_feat = jax.random.normal(next(keys), (B, N, tf_dim), jnp.float32)
    ligand_bonds_feat = jax.random.normal(next(keys), (B, N, N, bond_dim), jnp.float32)
    input_positions = 5.0 * jax.random.normal(next(keys), (B, N, 3), jnp.float32)
    protein_residue_index = jnp.tile(jnp.arange(N, dtype=jnp.float32), (B, 1))
    token_mask = jnp.ones((B, N), jnp.float32)
    protein_mask = jnp.concatenate(
        [jnp.ones((B, 10), jnp.float32), jnp.zeros((B, N - 10), jnp.float32)], axis=1)
    ligand_mask = 1.0 - protein_mask
    protein_distogram_mask = jax.random.bernoulli(next(keys), 0.3, (B, N)).astype(jnp.float32)

    args = (token_mask, protein_mask, ligand_mask, target_feat, ligand_bonds_feat,
            input_positions, protein_residue_index, protein_distogram_mask)

    tf_m, pair_emb = structure_input_embedder(params, cfg, *args)
    jax.block_until_ready((tf_m, pair_emb))

    tf_m_ref, pair_ref = reference_forward(params, cfg, *args)
    assert tf_m.shape == (B, N, c_m) and pair_emb.shape == (B, N, N, c_z)
    assert jnp.allclose(tf_m, tf_m_ref, rtol=2e-2, atol=2e-2), "tf_m mismatch"
    assert jnp.allclose(pair_emb, pair_ref, rtol=2e-2, atol=2e-2), "pair_emb mismatch"

    print("KERNEL_OK")
</pallas_src>

<mosaic_0001>
module attributes {stable_mosaic.version = 11 : i64} {
  func.func @_single_kernel(%arg0: i32, %arg1: i32, %arg2: memref<1x16x32xf32, #tpu.memory_space<vmem>>, %arg3: memref<32x96xf32, #tpu.memory_space<vmem>>, %arg4: memref<1x96xf32, #tpu.memory_space<vmem>>, %arg5: memref<1x32xf32, #tpu.memory_space<vmem>>, %arg6: memref<1x32xf32, #tpu.memory_space<vmem>>, %arg7: memref<1x16x32xf32, #tpu.memory_space<vmem>>, %arg8: memref<1x16x32xf32, #tpu.memory_space<vmem>>, %arg9: memref<1x16x32xf32, #tpu.memory_space<vmem>>) attributes {dimension_semantics = [#tpu.dimension_semantics<parallel>, #tpu.dimension_semantics<parallel>], iteration_bounds = array<i64: 2, 1>, scalar_prefetch = 0 : i64, scratch_operands = 0 : i64, tpu.core_type = #tpu.core_type<tc>, window_params = [{transform_indices = @transform_0, window_bounds = array<i64: 1, 16, 32>}, {pipeline_mode = #tpu.pipeline_mode<synchronous>, transform_indices = @transform_1, window_bounds = array<i64: 32, 96>}, {pipeline_mode = #tpu.pipeline_mode<synchronous>, transform_indices = @transform_2, window_bounds = array<i64: 1, 96>}, {pipeline_mode = #tpu.pipeline_mode<synchronous>, transform_indices = @transform_3, window_bounds = array<i64: 1, 32>}, {pipeline_mode = #tpu.pipeline_mode<synchronous>, transform_indices = @transform_4, window_bounds = array<i64: 1, 32>}, {transform_indices = @transform_5, window_bounds = array<i64: 1, 16, 32>}, {transform_indices = @transform_6, window_bounds = array<i64: 1, 16, 32>}, {transform_indices = @transform_7, window_bounds = array<i64: 1, 16, 32>}]} {
    %c0 = arith.constant 0 : index
    %c0_0 = arith.constant 0 : index
    %c0_1 = arith.constant 0 : index
    %0 = vector.load %arg2[%c0, %c0_0, %c0_1] : memref<1x16x32xf32, #tpu.memory_space<vmem>>, vector<1x16x32xf32>
    %1 = vector.shape_cast %0 : vector<1x16x32xf32> to vector<16x32xf32>
    %c0_2 = arith.constant 0 : index
    %c0_3 = arith.constant 0 : index
    %2 = vector.load %arg3[%c0_2, %c0_3] : memref<32x96xf32, #tpu.memory_space<vmem>>, vector<32x96xf32>
    %cst = arith.constant dense<0.000000e+00> : vector<16x96xf32>
    %3 = tpu.matmul %1, %2, %cst {dimension_numbers = #tpu.dot_dimension_numbers<[1], [0], [0], [1], [0, 0, 1, 1], [], []>} : vector<16x32xf32>, vector<32x96xf32>, vector<16x96xf32> -> vector<16x96xf32>
    %c0_4 = arith.constant 0 : index
    %c0_5 = arith.constant 0 : index
    %4 = vector.load %arg4[%c0_4, %c0_5] : memref<1x96xf32, #tpu.memory_space<vmem>>, vector<1x96xf32>
    %5 = vector.broadcast %4 : vector<1x96xf32> to vector<16x96xf32>
    %6 = arith.addf %3, %5 : vector<16x96xf32>
    %7 = vector.extract_strided_slice %6 {offsets = [0, 0], sizes = [16, 32], strides = [1, 1]} : vector<16x96xf32> to vector<16x32xf32>
    %c0_6 = arith.constant 0 : index
    %c0_7 = arith.constant 0 : index
    %c0_8 = arith.constant 0 : index
    %8 = vector.load %arg7[%c0_6, %c0_7, %c0_8] : memref<1x16x32xf32, #tpu.memory_space<vmem>>, vector<1x16x32xf32>
    %9 = vector.shape_cast %8 : vector<1x16x32xf32> to vector<16x32xf32>
    %10 = vector.shape_cast %7 : vector<16x32xf32> to vector<1x16x32xf32>
    tpu.vector_store %arg7[%c0_6, %c0_7, %c0_8], %10 {strides = array<i32>} : memref<1x16x32xf32, #tpu.memory_space<vmem>>, vector<1x16x32xf32>,
    %11 = vector.extract_strided_slice %6 {offsets = [0, 32], sizes = [16, 32], strides = [1, 1]} : vector<16x96xf32> to vector<16x32xf32>
    %c0_9 = arith.constant 0 : index
    %c0_10 = arith.constant 0 : index
    %c0_11 = arith.constant 0 : index
    %12 = vector.load %arg8[%c0_9, %c0_10, %c0_11] : memref<1x16x32xf32, #tpu.memory_space<vmem>>, vector<1x16x32xf32>
    %13 = vector.shape_cast %12 : vector<1x16x32xf32> to vector<16x32xf32>
    %14 = vector.shape_cast %11 : vector<16x32xf32> to vector<1x16x32xf32>
    tpu.vector_store %arg8[%c0_9, %c0_10, %c0_11], %14 {strides = array<i32>} : memref<1x16x32xf32, #tpu.memory_space<vmem>>, vector<1x16x32xf32>,
    %15 = vector.extract_strided_slice %6 {offsets = [0, 64], sizes = [16, 32], strides = [1, 1]} : vector<16x96xf32> to vector<16x32xf32>
    %c0_12 = arith.constant 0 : index
    %c0_13 = arith.constant 0 : index
    %16 = vector.load %arg5[%c0_12, %c0_13] : memref<1x32xf32, #tpu.memory_space<vmem>>, vector<1x32xf32>
    %c0_14 = arith.constant 0 : index
    %c0_15 = arith.constant 0 : index
    %17 = vector.load %arg6[%c0_14, %c0_15] : memref<1x32xf32, #tpu.memory_space<vmem>>, vector<1x32xf32>
    %cst_16 = arith.constant dense<0.000000e+00> : vector<16xf32>
    %18 = vector.multi_reduction <add>, %15, %cst_16 [1] : vector<16x32xf32> to vector<16xf32>
    %19 = vector.shape_cast %18 : vector<16xf32> to vector<16x1xf32>
    %cst_17 = arith.constant 3.200000e+01 : f32
    %20 = vector.broadcast %cst_17 : f32 to vector<16x1xf32>
    %21 = arith.divf %19, %20 : vector<16x1xf32>
    %22 = vector.broadcast %21 : vector<16x1xf32> to vector<16x32xf32>
    %23 = arith.subf %15, %22 : vector<16x32xf32>
    %24 = arith.mulf %23, %23 : vector<16x32xf32>
    %cst_18 = arith.constant dense<0.000000e+00> : vector<16xf32>
    %25 = vector.multi_reduction <add>, %24, %cst_18 [1] : vector<16x32xf32> to vector<16xf32>
    %26 = vector.shape_cast %25 : vector<16xf32> to vector<16x1xf32>
    %cst_19 = arith.constant 3.200000e+01 : f32
    %27 = vector.broadcast %cst_19 : f32 to vector<16x1xf32>
    %28 = arith.divf %26, %27 : vector<16x1xf32>
    %29 = vector.broadcast %21 : vector<16x1xf32> to vector<16x32xf32>
    %30 = arith.subf %15, %29 : vector<16x32xf32>
    %cst_20 = arith.constant 9.99999974E-6 : f32
    %31 = vector.broadcast %cst_20 : f32 to vector<16x1xf32>
    %32 = arith.addf %28, %31 : vector<16x1xf32>
    %33 = math.rsqrt %32 : vector<16x1xf32>
    %34 = vector.broadcast %33 : vector<16x1xf32> to vector<16x32xf32>
    %35 = arith.mulf %30, %34 : vector<16x32xf32>
    %36 = vector.broadcast %16 : vector<1x32xf32> to vector<16x32xf32>
    %37 = arith.mulf %35, %36 : vector<16x32xf32>
    %38 = vector.broadcast %17 : vector<1x32xf32> to vector<16x32xf32>
    %39 = arith.addf %37, %38 : vector<16x32xf32>
    %c0_21 = arith.constant 0 : index
    %c0_22 = arith.constant 0 : index
    %c0_23 = arith.constant 0 : index
    %40 = vector.load %arg9[%c0_21, %c0_22, %c0_23] : memref<1x16x32xf32, #tpu.memory_space<vmem>>, vector<1x16x32xf32>
    %41 = vector.shape_cast %40 : vector<1x16x32xf32> to vector<16x32xf32>
    %42 = vector.shape_cast %39 : vector<16x32xf32> to vector<1x16x32xf32>
    tpu.vector_store %arg9[%c0_21, %c0_22, %c0_23], %42 {strides = array<i32>} : memref<1x16x32xf32, #tpu.memory_space<vmem>>, vector<1x16x32xf32>,
    return
  }
  func.func @transform_0(%arg0: i32, %arg1: i32) -> (i32, i32, i32) {
    %c0_i32 = arith.constant 0 : i32
    %c0_i32_0 = arith.constant 0 : i32
    return %arg0, %arg1, %c0_i32 : i32, i32, i32
  }
  func.func @transform_1(%arg0: i32, %arg1: i32) -> (i32, i32) {
    %c0_i32 = arith.constant 0 : i32
    %c0_i32_0 = arith.constant 0 : i32
    %c0_i32_1 = arith.constant 0 : i32
    return %c0_i32, %c0_i32_0 : i32, i32
  }
  func.func @transform_2(%arg0: i32, %arg1: i32) -> (i32, i32) {
    %c0_i32 = arith.constant 0 : i32
    %c0_i32_0 = arith.constant 0 : i32
    %c0_i32_1 = arith.constant 0 : i32
    return %c0_i32, %c0_i32_0 : i32, i32
  }
  func.func @transform_3(%arg0: i32, %arg1: i32) -> (i32, i32) {
    %c0_i32 = arith.constant 0 : i32
    %c0_i32_0 = arith.constant 0 : i32
    %c0_i32_1 = arith.constant 0 : i32
    return %c0_i32, %c0_i32_0 : i32, i32
  }
  func.func @transform_4(%arg0: i32, %arg1: i32) -> (i32, i32) {
    %c0_i32 = arith.constant 0 : i32
    %c0_i32_0 = arith.constant 0 : i32
    %c0_i32_1 = arith.constant 0 : i32
    return %c0_i32, %c0_i32_0 : i32, i32
  }
  func.func @transform_5(%arg0: i32, %arg1: i32) -> (i32, i32, i32) {
    %c0_i32 = arith.constant 0 : i32
    %c0_i32_0 = arith.constant 0 : i32
    return %arg0, %arg1, %c0_i32 : i32, i32, i32
  }
  func.func @transform_6(%arg0: i32, %arg1: i32) -> (i32, i32, i32) {
    %c0_i32 = arith.constant 0 : i32
    %c0_i32_0 = arith.constant 0 : i32
    return %arg0, %arg1, %c0_i32 : i32, i32, i32
  }
  func.func @transform_7(%arg0: i32, %arg1: i32) -> (i32, i32, i32) {
    %c0_i32 = arith.constant 0 : i32
    %c0_i32_0 = arith.constant 0 : i32
    return %arg0, %arg1, %c0_i32 : i32, i32, i32
  }
}

</mosaic_0001>

<llo_original>
// kernel: tpu_custom_call.1
$region0: #{tpu_custom_call.1}
  #allocation0 [shape = 'u32[]', space=smem, size = 0x4, offset = 0x4, fixed_abs, tag = 'smem constant byte address 0x4 - core index']
  #allocation1 [shape = 'u32[144,128]{1,0:T(1,128)}', space=vmem, size = 0x12000, scoped, tag = 'internal scratch']
  %s0 = inlined_call_operand.hbm [shape: f32[2,16,32], index: 0, kind: input, shape index: {}]
  %s1 = inlined_call_operand.hbm [shape: f32[32,96], index: 1, kind: input, shape index: {}]
  %s2 = inlined_call_operand.vmem [shape: f32[1,96], index: 2, kind: input, shape index: {}]
  %s3 = inlined_call_operand.vmem [shape: f32[1,32], index: 3, kind: input, shape index: {}]
  %s4 = inlined_call_operand.vmem [shape: f32[1,32], index: 4, kind: input, shape index: {}]
  %s5 = inlined_call_operand.hbm [shape: f32[2,16,32], index: 5, kind: output, shape index: {0}]
  %s6 = inlined_call_operand.hbm [shape: f32[2,16,32], index: 6, kind: output, shape index: {1}]
  %s7 = inlined_call_operand.hbm [shape: f32[2,16,32], index: 7, kind: output, shape index: {2}]
  %8 = xla_tuple %s5, %s6, %s7
  %s9 = sld [smem:[#allocation0]]
  $region77: #{tpu_custom_call.1} parent=0
    _
  %s11 = ssub.s32 1, %s9
  %s12 = scalar_select 0, %s11, %s9
  $region1: #{tpu_custom_call.1} parent=0
    #allocation2 [shape = 'u8[16384]{0}', space=vmem, size = 0x4000, scoped, tag = 'input window, operand 0']
    #allocation3 [shape = 's32[2]{0}', space=sflag, size = 0x8, scoped, tag = 'scoped memory for tpu_custom_call.1']
    #allocation4 [shape = 's32[2]{0}', space=sflag, size = 0x8, scoped, tag = 'scoped memory for tpu_custom_call.1']
    #allocation5 [shape = 'u8[16384]{0}', space=vmem, size = 0x4000, scoped, tag = 'input window, operand 1, single buffered']
    #allocation6 [shape = 's32[1]{0}', space=sflag, size = 0x4, scoped, tag = 'scoped memory for tpu_custom_call.1']
    #allocation7 [shape = 'u8[16384]{0}', space=vmem, size = 0x4000, scoped, tag = 'output window, operand 0']
    #allocation8 [shape = 'u8[16384]{0}', space=vmem, size = 0x4000, scoped, tag = 'output window, operand 1']
    #allocation9 [shape = 's32[2]{0}', space=sflag, size = 0x8, scoped, tag = 'scoped memory for tpu_custom_call.1']
    #allocation10 [shape = 'u8[16384]{0}', space=vmem, size = 0x4000, scoped, tag = 'output window, operand 2']
    %13 = vsyncpa [#allocation3], 0
    %s14 = scalar_lea.sflag [#allocation3], 1
    %15 = vsyncpa %s14, 0
    %16 = vsyncpa [#allocation6], 0
    %17 = vsyncpa [#allocation4], 0
    %s18 = scalar_lea.sflag [#allocation4], 1
    %19 = vsyncpa %s18, 0
    %20 = vsyncpa [#allocation9], 0
    %s21 = scalar_lea.sflag [#allocation9], 1
    %22 = vsyncpa %s21, 0
    loop: start=0, step=1, limit=4
    $region2: #{tpu_custom_call.1} parent=1 // loop_pre_header
      _
    $region3: #{tpu_custom_call.1} parent=1 // loop_header
      %s24 = sphi 0, %s28
      %p25 = scmp.ge.s32.totalorder %s24, 4
      %s31 = sphi 0, %s43
      %s32 = sphi 0, %s39
      %s33 = sphi 0, %s31
      %s34 = sphi 0, %s32
      %s35 = sphi 0, %s33
      %s36 = sphi 0, %s34
      %s48 = sphi 0, %s50
      %s51 = sphi 0, %s48
      %s52 = sphi 0, %s51
      %s68 = sphi 0, %s52
      %s72 = sphi 0, %s72
      %s74 = sphi 0, %s72
      %s75 = sphi 0, %s74
      %s89 = sphi 0, %s75
      %s93 = sphi 0, %s93
      %s95 = sphi 0, %s93
      %s96 = sphi 0, %s95
      %s110 = sphi 0, %s96
      %s114 = sphi 0, %s114
      %s116 = sphi 0, %s114
      %s117 = sphi 0, %s116
      %s131 = sphi 0, %s117
      %s135 = sphi 0, %s135
      %s137 = sphi 0, %s135
      %s138 = sphi 0, %s137
      %s152 = sphi 0, %s138
      %s160 = sphi 0, %s162
      %s163 = sphi 0, %s160
      %s164 = sphi 0, %s163
      %s180 = sphi 0, %s164
      %s188 = sphi 0, %s190
      %s191 = sphi 0, %s188
      %s192 = sphi 0, %s191
      %s208 = sphi 0, %s192
      %s216 = sphi 0, %s218
      %s219 = sphi 0, %s216
      %s220 = sphi 0, %s219
      %s236 = sphi 0, %s220
    $region4: #{tpu_custom_call.1} parent=1 // loop_header_branch
      %27 = sbr.rel (%p25) target = $region8
    $region5: #{tpu_custom_call.1} parent=1 // loop_body
      %s29 = ssub.s32 %s24, 1
      %s30 = ssub.s32 %s24, 2
      %s37 = sadd.s32 1, %s32
      %p38 = scmp.ge.s32.totalorder %s37, 1
      %s39 = scalar_select %p38, 0, %s37
      %s40 = sadd.s32 1, %s31
      %s41 = scalar_select %p38, %s40, %s31
      %p42 = scmp.ge.s32.totalorder %s41, 2
      %s43 = scalar_select %p42, 0, %s41
      %s44 = ssub.s32 %s31, %s43
      %s45 = ssub.s32 %s32, %s39
      %s46 = sor.u32 %s44, %s45
      %p47 = scmp.eq.s32.totalorder %s46, 0
      %s49 = sadd.s32 %s48, 1
      %s50 = scalar_select %p47, %s48, %s49
      %p53 = pneg %p47
      %p54 = scmp.eq.s32.totalorder %s24, 1
      %p55 = por %p53, %p54
      %p56 = scmp.ne.s32.totalorder %s48, %s51
      %p57 = scmp.eq.s32.totalorder %s24, 0
      %p58 = por %p56, %p57
      %p59 = scmp.ne.s32.totalorder %s48, %s51
      %p60 = scmp.eq.s32.totalorder %s29, 1
      %p61 = por %p59, %p60
      %p62 = scmp.ne.s32.totalorder %s51, %s52
      %p63 = scmp.eq.s32.totalorder %s29, 0
      %p64 = por %p62, %p63
      %p65 = scmp.ne.s32.totalorder %s51, %s52
      %p66 = scmp.eq.s32.totalorder %s30, 1
      %p67 = por %p65, %p66
      %p69 = scmp.ne.s32.totalorder %s52, %s68
      %p70 = scmp.eq.s32.totalorder %s30, 0
      %p71 = por %p69, %p70
      %s73 = sadd.s32 %s72, 1
      %p76 = scmp.eq.s32.totalorder %s24, 1
      %p77 = scmp.ne.s32.totalorder %s72, %s74
      %p78 = scmp.eq.s32.totalorder %s24, 0
      %p79 = por %p77, %p78
      %p80 = scmp.ne.s32.totalorder %s72, %s74
      %p81 = scmp.eq.s32.totalorder %s29, 1
      %p82 = por %p80, %p81
      %p83 = scmp.ne.s32.totalorder %s74, %s75
      %p84 = scmp.eq.s32.totalorder %s29, 0
      %p85 = por %p83, %p84
      %p86 = scmp.ne.s32.totalorder %s74, %s75
      %p87 = scmp.eq.s32.totalorder %s30, 1
      %p88 = por %p86, %p87
      %p90 = scmp.ne.s32.totalorder %s75, %s89
      %p91 = scmp.eq.s32.totalorder %s30, 0
      %p92 = por %p90, %p91
      %s94 = sadd.s32 %s93, 1
      %p97 = scmp.eq.s32.totalorder %s24, 1
      %p98 = scmp.ne.s32.totalorder %s93, %s95
      %p99 = scmp.eq.s32.totalorder %s24, 0
      %p100 = por %p98, %p99
      %p101 = scmp.ne.s32.totalorder %s93, %s95
      %p102 = scmp.eq.s32.totalorder %s29, 1
      %p103 = por %p101, %p102
      %p104 = scmp.ne.s32.totalorder %s95, %s96
      %p105 = scmp.eq.s32.totalorder %s29, 0
      %p106 = por %p104, %p105
      %p107 = scmp.ne.s32.totalorder %s95, %s96
      %p108 = scmp.eq.s32.totalorder %s30, 1
      %p109 = por %p107, %p108
      %p111 = scmp.ne.s32.totalorder %s96, %s110
      %p112 = scmp.eq.s32.totalorder %s30, 0
      %p113 = por %p111, %p112
      %s115 = sadd.s32 %s114, 1
      %p118 = scmp.eq.s32.totalorder %s24, 1
      %p119 = scmp.ne.s32.totalorder %s114, %s116
      %p120 = scmp.eq.s32.totalorder %s24, 0
      %p121 = por %p119, %p120
      %p122 = scmp.ne.s32.totalorder %s114, %s116
      %p123 = scmp.eq.s32.totalorder %s29, 1
      %p124 = por %p122, %p123
      %p125 = scmp.ne.s32.totalorder %s116, %s117
      %p126 = scmp.eq.s32.totalorder %s29, 0
      %p127 = por %p125, %p126
      %p128 = scmp.ne.s32.totalorder %s116, %s117
      %p129 = scmp.eq.s32.totalorder %s30, 1
      %p130 = por %p128, %p129
      %p132 = scmp.ne.s32.totalorder %s117, %s131
      %p133 = scmp.eq.s32.totalorder %s30, 0
      %p134 = por %p132, %p133
      %s136 = sadd.s32 %s135, 1
      %p139 = scmp.eq.s32.totalorder %s24, 1
      %p140 = scmp.ne.s32.totalorder %s135, %s137
      %p141 = scmp.eq.s32.totalorder %s24, 0
      %p142 = por %p140, %p141
      %p143 = scmp.ne.s32.totalorder %s135, %s137
      %p144 = scmp.eq.s32.totalorder %s29, 1
      %p145 = por %p143, %p144
      %p146 = scmp.ne.s32.totalorder %s137, %s138
      %p147 = scmp.eq.s32.totalorder %s29, 0
      %p148 = por %p146, %p147
      %p149 = scmp.ne.s32.totalorder %s137, %s138
      %p150 = scmp.eq.s32.totalorder %s30, 1
      %p151 = por %p149, %p150
      %p153 = scmp.ne.s32.totalorder %s138, %s152
      %p154 = scmp.eq.s32.totalorder %s30, 0
      %p155 = por %p153, %p154
      %s156 = ssub.s32 %s31, %s43
      %s157 = ssub.s32 %s32, %s39
      %s158 = sor.u32 %s156, %s157
      %p159 = scmp.eq.s32.totalorder %s158, 0
      %s161 = sadd.s32 %s160, 1
      %s162 = scalar_select %p159, %s160, %s161
      %p165 = pneg %p159
      %p166 = scmp.eq.s32.totalorder %s24, 1
      %p167 = por %p165, %p166
      %p168 = scmp.ne.s32.totalorder %s160, %s163
      %p169 = scmp.eq.s32.totalorder %s24, 0
      %p170 = por %p168, %p169
      %p171 = scmp.ne.s32.totalorder %s160, %s163
      %p172 = scmp.eq.s32.totalorder %s29, 1
      %p173 = por %p171, %p172
      %p174 = scmp.ne.s32.totalorder %s163, %s164
      %p175 = scmp.eq.s32.totalorder %s29, 0
      %p176 = por %p174, %p175
      %p177 = scmp.ne.s32.totalorder %s163, %s164
      %p178 = scmp.eq.s32.totalorder %s30, 1
      %p179 = por %p177, %p178
      %p181 = scmp.ne.s32.totalorder %s164, %s180
      %p182 = scmp.eq.s32.totalorder %s30, 0
      %p183 = por %p181, %p182
      %s184 = ssub.s32 %s31, %s43
      %s185 = ssub.s32 %s32, %s39
      %s186 = sor.u32 %s184, %s185
      %p187 = scmp.eq.s32.totalorder %s186, 0
      %s189 = sadd.s32 %s188, 1
      %s190 = scalar_select %p187, %s188, %s189
      %p193 = pneg %p187
      %p194 = scmp.eq.s32.totalorder %s24, 1
      %p195 = por %p193, %p194
      %p196 = scmp.ne.s32.totalorder %s188, %s191
      %p197 = scmp.eq.s32.totalorder %s24, 0
      %p198 = por %p196, %p197
      %p199 = scmp.ne.s32.totalorder %s188, %s191
      %p200 = scmp.eq.s32.totalorder %s29, 1
      %p201 = por %p199, %p200
      %p202 = scmp.ne.s32.totalorder %s191, %s192
      %p203 = scmp.eq.s32.totalorder %s29, 0
      %p204 = por %p202, %p203
      %p205 = scmp.ne.s32.totalorder %s191, %s192
      %p206 = scmp.eq.s32.totalorder %s30, 1
      %p207 = por %p205, %p206
      %p209 = scmp.ne.s32.totalorder %s192, %s208
      %p210 = scmp.eq.s32.totalorder %s30, 0
      %p211 = por %p209, %p210
      %s212 = ssub.s32 %s31, %s43
      %s213 = ssub.s32 %s32, %s39
      %s214 = sor.u32 %s212, %s213
      %p215 = scmp.eq.s32.totalorder %s214, 0
      %s217 = sadd.s32 %s216, 1
      %s218 = scalar_select %p215, %s216, %s217
      %p221 = pneg %p215
      %p222 = scmp.eq.s32.totalorder %s24, 1
      %p223 = por %p221, %p222
      %p224 = scmp.ne.s32.totalorder %s216, %s219
      %p225 = scmp.eq.s32.totalorder %s24, 0
      %p226 = por %p224, %p225
      %p227 = scmp.ne.s32.totalorder %s216, %s219
      %p228 = scmp.eq.s32.totalorder %s29, 1
      %p229 = por %p227, %p228
      %p230 = scmp.ne.s32.totalorder %s219, %s220
      %p231 = scmp.eq.s32.totalorder %s29, 0
      %p232 = por %p230, %p231
      %p233 = scmp.ne.s32.totalorder %s219, %s220
      %p234 = scmp.eq.s32.totalorder %s30, 1
      %p235 = por %p233, %p234
      %p237 = scmp.ne.s32.totalorder %s220, %s236
      %p238 = scmp.eq.s32.totalorder %s30, 0
      %p239 = por %p237, %p238
      %p240 = scmp.le.s32.totalorder 1, %s24
      %p241 = scmp.lt.s32.totalorder %s24, 3
      %p242 = pnand %p240, %p241
      %p243 = pneg %p242
      // Predicated region
      $region9: #{tpu_custom_call.1} parent=5 // pred_check
        _
      $region10: #{tpu_custom_call.1} parent=5 // pred_check_branch
        %245 = sbr.rel (%p242) target = $region12
      $region11: #{tpu_custom_call.1} parent=5 // pred_region
        %s246 = ssub.s32 %s24, 1
        // Predicated region
        $region13: #{tpu_custom_call.1} parent=11 // pred_check
          %p247 = pneg %p85
        $region14: #{tpu_custom_call.1} parent=11 // pred_check_branch
          %249 = sbr.rel (%p247) target = $region16
        $region15: #{tpu_custom_call.1} parent=11 // pred_region
          %s251 = ssub.s32 512, 512
          %252 = vsyncadd [#allocation6], %s251
          %s253 = sshll.u32 [#allocation5], 4
          %s254 = int_to_ptr.vmem [resolvable:$true] %s253
          %259 = dma.hbm_to_vmem [thread:$0]  %s1, 512, %s254, [#allocation6], 128, 128, 8
        $region16: #{tpu_custom_call.1} parent=11 // pred_fallthru
          _
        // Predicated region
        $region17: #{tpu_custom_call.1} parent=11 // pred_check
          %p260 = pneg %p106
        $region18: #{tpu_custom_call.1} parent=11 // pred_check_branch
          %262 = sbr.rel (%p260) target = $region20
        $region19: #{tpu_custom_call.1} parent=11 // pred_region
          _
        $region20: #{tpu_custom_call.1} parent=11 // pred_fallthru
          _
        // Predicated region
        $region21: #{tpu_custom_call.1} parent=11 // pred_check
          %p263 = pneg %p127
        $region22: #{tpu_custom_call.1} parent=11 // pred_check_branch
          %265 = sbr.rel (%p263) target = $region24
        $region23: #{tpu_custom_call.1} parent=11 // pred_region
          _
        $region24: #{tpu_custom_call.1} parent=11 // pred_fallthru
          _
        // Predicated region
        $region25: #{tpu_custom_call.1} parent=11 // pred_check
          %p266 = pneg %p148
        $region26: #{tpu_custom_call.1} parent=11 // pred_check_branch
          %268 = sbr.rel (%p266) target = $region28
        $region27: #{tpu_custom_call.1} parent=11 // pred_region
          _
        $region28: #{tpu_custom_call.1} parent=11 // pred_fallthru
          _
      $region12: #{tpu_custom_call.1} parent=5 // pred_fallthru
        _
      %p269 = scmp.lt.s32.totalorder %s24, 2
      // Predicated region
      $region29: #{tpu_custom_call.1} parent=5 // pred_check
        %p270 = pneg %p269
      $region30: #{tpu_custom_call.1} parent=5 // pred_check_branch
        %272 = sbr.rel (%p270) target = $region32
      $region31: #{tpu_custom_call.1} parent=5 // pred_region
        // Predicated region
        $region33: #{tpu_custom_call.1} parent=31 // pred_check
          %p273 = pneg %p58
        $region34: #{tpu_custom_call.1} parent=31 // pred_check_branch
          %275 = sbr.rel (%p273) target = $region36
        $region35: #{tpu_custom_call.1} parent=31 // pred_region
          %s276 = sand.u32 %s48, 1
          %s277 = scalar_lea.sflag [#allocation3], %s276
          %s278 = sand.u32 %s48, 1
          %s279 = smul.addr %s278, 16
          %s280 = scalar_lea.vmem [#allocation2], %s279
          %s281 = smul.u32 2, %s32
          %s283 = ssub.s32 256, 256
          %284 = vsyncadd %s277, %s283
          %s285 = smul.addr %s31, 2
          %s286 = sadd.s32 %s281, %s285
          %s287 = smul.addr %s286, 128
          %s288 = scalar_lea.hbm %s0, %s287
          %s289 = sshll.u32 %s280, 4
          %s290 = int_to_ptr.vmem [resolvable:$true] %s289
          %295 = dma.hbm_to_vmem [thread:$0]  %s288, 256, %s290, %s277, 128, 128, 8
        $region36: #{tpu_custom_call.1} parent=31 // pred_fallthru
          _
      $region32: #{tpu_custom_call.1} parent=5 // pred_fallthru
        _
      %p296 = scmp.le.s32.totalorder 1, %s24
      %p297 = scmp.lt.s32.totalorder %s24, 3
      %p298 = pnand %p296, %p297
      %p299 = pneg %p298
      // Predicated region
      $region37: #{tpu_custom_call.1} parent=5 // pred_check
        _
      $region38: #{tpu_custom_call.1} parent=5 // pred_check_branch
        %301 = sbr.rel (%p298) target = $region40
      $region39: #{tpu_custom_call.1} parent=5 // pred_region
        %s302 = ssub.s32 %s24, 1
        %s303 = sand.u32 %s51, 1
        %s304 = scalar_lea.sflag [#allocation3], %s303
        %s305 = sand.u32 %s51, 1
        %s306 = smul.addr %s305, 16
        %s307 = scalar_lea.vmem [#allocation2], %s306
        // Predicated region
        $region41: #{tpu_custom_call.1} parent=39 // pred_check
          %p308 = pneg %p64
        $region42: #{tpu_custom_call.1} parent=39 // pred_check_branch
          %310 = sbr.rel (%p308) target = $region44
        $region43: #{tpu_custom_call.1} parent=39 // pred_region
          %311 = dma.done %s304, 256
        $region44: #{tpu_custom_call.1} parent=39 // pred_fallthru
          _
        // Predicated region
        $region45: #{tpu_custom_call.1} parent=39 // pred_check
          %p312 = pneg %p85
        $region46: #{tpu_custom_call.1} parent=39 // pred_check_branch
          %314 = sbr.rel (%p312) target = $region48
        $region47: #{tpu_custom_call.1} parent=39 // pred_region
          %315 = dma.done [#allocation6], 512
        $region48: #{tpu_custom_call.1} parent=39 // pred_fallthru
          _
        %s316 = sand.u32 %s51, 1
        %s317 = scalar_lea.sflag [#allocation3], %s316
        %s318 = sand.u32 %s51, 1
        %s319 = smul.addr %s318, 16
        %s320 = scalar_lea.vmem [#allocation2], %s319
        %p321 = pneg %p64
        %p322 = pneg %p61
        %p323 = pneg %p85
        %p324 = pneg %p82
        %p325 = pneg %p106
        %p326 = pneg %p103
        %p327 = pneg %p127
        %p328 = pneg %p124
        %p329 = pneg %p148
        %p330 = pneg %p145
        %p331 = pneg %p176
        %p332 = pneg %p173
        %s333 = sand.u32 %s163, 1
        %s334 = scalar_lea.sflag [#allocation4], %s333
        %s335 = sand.u32 %s163, 1
        %s336 = smul.addr %s335, 16
        %s337 = scalar_lea.vmem [#allocation7], %s336
        %p338 = pneg %p204
        %p339 = pneg %p201
        %s340 = sand.u32 %s29, 1
        %s341 = scalar_lea.sflag [#allocation9], %s340
        %s342 = sand.u32 %s191, 1
        %s343 = smul.addr %s342, 16
        %s344 = scalar_lea.vmem [#allocation8], %s343
        %p345 = pneg %p232
        %p346 = pneg %p229
        %s347 = sand.u32 %s29, 1
        %s348 = scalar_lea.sflag [#allocation9], %s347
        %s349 = sand.u32 %s219, 1
        %s350 = smul.addr %s349, 16
        %s351 = scalar_lea.vmem [#allocation10], %s350
        %s352 = smul.u32 2, %s34
        %s353 = smul.u32 2, %s34
        %s354 = smul.u32 2, %s34
        %s355 = smul.u32 2, %s34
        %v356 = vld [vmem:[%s307] sm:$0xff]
        %v357 = vld [vmem:[%s307 + $0x8] sm:$0xff]
        %v358 = vld [vmem:[#allocation5] sm:$0xff]
        %v359 = vld [vmem:[#allocation5 + $0x8] sm:$0xff]
        %v360 = vld [vmem:[#allocation5 + $0x10] sm:$0xff]
        %v361 = vld [vmem:[#allocation5 + $0x18] sm:$0xff]
        %v362 = vld [vmem:[%s2] sm:$0x1]
        %v364 = vlaneseq
        %v365 = vshrl.u32 %v364, 7
        %v366 = vsub.s32 0, %v365
        %v367 = vrot.slane %v362, %v366
        %vm369 = vcmask 261120
        %v371 = vsel %vm369, %v356, 0
        %v374 = vsel %vm369, %v357, 0
        %376 = vmatprep.subr.mxu0 0.0
        %377 = vmatpush1.msra.mxu0 %v358
        %378 = vmatprep.subr.mxu0 0.0
        %379 = vmatpush1.msra.mxu0 %v359
        %380 = vmatprep.subr.mxu0 0.0
        %381 = vmatpush1.msra.mxu0 %v360
        %382 = vmatprep.subr.mxu0 0.0
        %383 = vmatpush1.msra.mxu0 %v361
        %384 = vmatprep.subr.mxu0 0.0
        %385 = vmatpush1.msra.mxu0 0.0
        %386 = vmatprep.subr.mxu0 0.0
        %387 = vmatpush1.msra.mxu0 0.0
        %388 = vmatprep.subr.mxu0 0.0
        %389 = vmatpush1.msra.mxu0 0.0
        %390 = vmatprep.subr.mxu0 0.0
        %391 = vmatpush1.msra.mxu0 0.0
        %392 = vmatprep.subr.mxu0 0.0
        %393 = vmatpush1.msra.mxu0 0.0
        %394 = vmatprep.subr.mxu0 0.0
        %395 = vmatpush1.msra.mxu0 0.0
        %396 = vmatprep.subr.mxu0 0.0
        %397 = vmatpush1.msra.mxu0 0.0
        %398 = vmatprep.subr.mxu0 0.0
        %399 = vmatpush1.msra.mxu0 0.0
        %400 = vmatprep.subr.mxu0 0.0
        %401 = vmatpush1.msra.mxu0 0.0
        %402 = vmatprep.subr.mxu0 0.0
        %403 = vmatpush1.msra.mxu0 0.0
        %404 = vmatprep.subr.mxu0 0.0
        %405 = vmatpush1.msra.mxu0 0.0
        %406 = vmatprep.subr.mxu0 0.0
        %407 = vmatpush1.msra.mxu0 0.0
        %408 = vmatprep.subr.mxu0 0.0
        %409 = vmatpush1.msra.mxu0 0.0
        %410 = vmatprep.subr.mxu0 0.0
        %411 = vmatpush1.msra.mxu0 0.0
        %412 = vmatprep.subr.mxu0 0.0
        %413 = vmatpush1.msra.mxu0 0.0
        %414 = vmatprep.subr.mxu0 0.0
        %415 = vmatpush1.msra.mxu0 0.0
        %416 = vmatprep.subr.mxu0 0.0
        %417 = vmatpush1.msra.mxu0 0.0
        %418 = vmatprep.subr.mxu0 0.0
        %419 = vmatpush1.msra.mxu0 0.0
        %420 = vmatprep.subr.mxu0 0.0
        %421 = vmatpush1.msra.mxu0 0.0
        %422 = vmatprep.subr.mxu0 0.0
        %423 = vmatpush1.msra.mxu0 0.0
        %424 = vmatprep.subr.mxu0 0.0
        %425 = vmatpush1.msra.mxu0 0.0
        %426 = vmatprep.subr.mxu0 0.0
        %427 = vmatpush1.msra.mxu0 0.0
        %428 = vmatprep.subr.mxu0 0.0
        %429 = vmatpush1.msra.mxu0 0.0
        %430 = vmatprep.subr.mxu0 0.0
        %431 = vmatpush1.msra.mxu0 0.0
        %432 = vmatprep.subr.mxu0 0.0
        %433 = vmatpush1.msra.mxu0 0.0
        %434 = vmatprep.subr.mxu0 0.0
        %435 = vmatpush1.msra.mxu0 0.0
        %436 = vmatprep.subr.mxu0 0.0
        %437 = vmatpush1.msra.mxu0 0.0
        %438 = vmatprep.subr.mxu0 0.0
        %439 = vmatpush1.msra.mxu0 0.0
        %440 = vmatprep.mubr.f32.mxu0 0.0
        %441 = vmatmul.mubr.f32.gmra.mrb[0].mxu0 %v371
        %v442 = vpop.f32.mrb[0].mxu0
        %v443 = vadd.f32 %v367, %v442
        %v444 = vpop.f32.mrb[0].mxu0
        %445 = vmatprep.mubr.f32.mxu0 0.0
        %446 = vmatmul.mubr.f32.gmra.mrb[0].mxu0 %v374
        %v447 = vpop.f32.mrb[0].mxu0
        %v448 = vadd.f32 %v367, %v447
        %v449 = vpop.f32.mrb[0].mxu0
        %450 = vdwg.mxu0
        %451 = vst.msk [vmem:[%s337] sm:$0xff] %vm369, %v443
        %452 = vst.msk [vmem:[%s337 + $0x8] sm:$0xff] %vm369, %v448
        %455 = vrot.lane.b32.xlu0 %v443, 96
        %v456 = vpop.permute.xlu0 %455
        %457 = vrot.lane.b32.xlu0 %v448, 96
        %v458 = vpop.permute.xlu0 %457
        %461 = vst.msk [vmem:[%s344] sm:$0xff] %vm369, %v456
        %462 = vst.msk [vmem:[%s344 + $0x8] sm:$0xff] %vm369, %v458
        %v463 = vld [vmem:[%s3] sm:$0x1]
        %v464 = vld [vmem:[%s4] sm:$0x1]
        %465 = vrot.lane.b32.xlu0 %v443, 64
        %v466 = vpop.permute.xlu0 %465
        %467 = vrot.lane.b32.xlu0 %v448, 64
        %v468 = vpop.permute.xlu0 %467
        %v471 = vsel %vm369, %v466, 0.0
        %472 = vadd.xlane.f32.xlu0 %v471
        %v473 = vpop.xlane.xlu0 %472
        %v474 = vsel %vm369, %v468, 0.0
        %475 = vadd.xlane.f32.xlu0 %v474
        %v476 = vpop.xlane.xlu0 %475
        %v477 = vrcp.pop 32.0
        %v478 = vmul.f32 %v473, %v477
        %v479 = vmul.f32 %v476, %v477
        %v480 = vsub.f32 %v443, %v478
        %v481 = vsub.f32 %v448, %v479
        %v482 = vmul.f32 %v480, %v480
        %v483 = vmul.f32 %v481, %v481
        %486 = vrot.lane.b32.xlu0 %v482, 64
        %v487 = vpop.permute.xlu0 %486
        %488 = vrot.lane.b32.xlu0 %v483, 64
        %v489 = vpop.permute.xlu0 %488
        %v492 = vsel %vm369, %v487, 0.0
        %493 = vadd.xlane.f32.xlu0 %v492
        %v494 = vpop.xlane.xlu0 %493
        %v495 = vsel %vm369, %v489, 0.0
        %496 = vadd.xlane.f32.xlu0 %v495
        %v497 = vpop.xlane.xlu0 %496
        %v498 = vmul.f32 %v494, %v477
        %v499 = vmul.f32 %v497, %v477
        %v500 = vadd.f32 %v498, 1e-05
        %v501 = vadd.f32 %v499, 1e-05
        %v502 = vrsqrt.pop %v500
        %v503 = vrsqrt.pop %v501
        %v504 = vmul.f32 %v480, %v502
        %v505 = vmul.f32 %v481, %v503
        %v507 = vlaneseq
        %v508 = vshrl.u32 %v507, 7
        %v509 = vsub.s32 0, %v508
        %v510 = vrot.slane %v463, %v509
        %511 = vrot.lane.b32.xlu0 %v510, 64
        %v512 = vpop.permute.xlu0 %511
        %v514 = vmul.f32 %v504, %v512
        %v515 = vmul.f32 %v505, %v512
        %v517 = vlaneseq
        %v518 = vshrl.u32 %v517, 7
        %v519 = vsub.s32 0, %v518
        %v520 = vrot.slane %v464, %v519
        %521 = vrot.lane.b32.xlu0 %v520, 64
        %v522 = vpop.permute.xlu0 %521
        %v524 = vadd.f32 %v514, %v522
        %v525 = vadd.f32 %v515, %v522
        %528 = vrot.lane.b32.xlu0 %v524, 64
        %v529 = vpop.permute.xlu0 %528
        %530 = vrot.lane.b32.xlu0 %v525, 64
        %v531 = vpop.permute.xlu0 %530
        %534 = vst.msk [vmem:[%s351] sm:$0xff] %vm369, %v529
        %535 = vst.msk [vmem:[%s351 + $0x8] sm:$0xff] %vm369, %v531
        %s536 = sand.u32 %s163, 1
        %s537 = scalar_lea.sflag [#allocation4], %s536
        %s538 = sand.u32 %s163, 1
        %s539 = smul.addr %s538, 16
        %s540 = scalar_lea.vmem [#allocation7], %s539
        %s541 = sand.u32 %s29, 1
        %s542 = scalar_lea.sflag [#allocation9], %s541
        %s543 = sand.u32 %s191, 1
        %s544 = smul.addr %s543, 16
        %s545 = scalar_lea.vmem [#allocation8], %s544
        %s546 = sand.u32 %s29, 1
        %s547 = scalar_lea.sflag [#allocation9], %s546
        %s548 = sand.u32 %s219, 1
        %s549 = smul.addr %s548, 16
        %s550 = scalar_lea.vmem [#allocation10], %s549
        // Predicated region
        $region49: #{tpu_custom_call.1} parent=39 // pred_check
          %p551 = pneg %p173
        $region50: #{tpu_custom_call.1} parent=39 // pred_check_branch
          %553 = sbr.rel (%p551) target = $region52
        $region51: #{tpu_custom_call.1} parent=39 // pred_region
          %s554 = smul.u32 2, %s34
          %s556 = ssub.s32 256, 256
          %557 = vsyncadd %s537, %s556
          %s558 = smul.addr %s33, 2
          %s559 = sadd.s32 %s554, %s558
          %s560 = smul.addr %s559, 128
          %s561 = scalar_lea.hbm %s5, %s560
          %s562 = sshll.u32 %s540, 4
          %s563 = int_to_ptr.vmem [resolvable:$true] %s562
          %568 = dma.vmem_to_hbm [thread:$0]  %s563, 256, %s561, %s537, 128, 128, 8
        $region52: #{tpu_custom_call.1} parent=39 // pred_fallthru
          _
        // Predicated region
        $region53: #{tpu_custom_call.1} parent=39 // pred_check
          %p569 = pneg %p201
        $region54: #{tpu_custom_call.1} parent=39 // pred_check_branch
          %571 = sbr.rel (%p569) target = $region56
        $region55: #{tpu_custom_call.1} parent=39 // pred_region
          %s572 = smul.u32 2, %s34
          %s574 = ssub.s32 256, 256
          %575 = vsyncadd %s542, %s574
          %s576 = smul.addr %s33, 2
          %s577 = sadd.s32 %s572, %s576
          %s578 = smul.addr %s577, 128
          %s579 = scalar_lea.hbm %s6, %s578
          %s580 = sshll.u32 %s545, 4
          %s581 = int_to_ptr.vmem [resolvable:$true] %s580
          %586 = dma.vmem_to_hbm [thread:$0]  %s581, 256, %s579, %s542, 128, 128, 8
        $region56: #{tpu_custom_call.1} parent=39 // pred_fallthru
          _
        // Predicated region
        $region57: #{tpu_custom_call.1} parent=39 // pred_check
          %p587 = pneg %p229
        $region58: #{tpu_custom_call.1} parent=39 // pred_check_branch
          %589 = sbr.rel (%p587) target = $region60
        $region59: #{tpu_custom_call.1} parent=39 // pred_region
          %s590 = smul.u32 2, %s34
          %s592 = ssub.s32 256, 256
          %593 = vsyncadd %s547, %s592
          %s594 = smul.addr %s33, 2
          %s595 = sadd.s32 %s590, %s594
          %s596 = smul.addr %s595, 128
          %s597 = scalar_lea.hbm %s7, %s596
          %s598 = sshll.u32 %s550, 4
          %s599 = int_to_ptr.vmem [resolvable:$true] %s598
          %604 = dma.vmem_to_hbm [thread:$0]  %s599, 256, %s597, %s547, 128, 128, 8
        $region60: #{tpu_custom_call.1} parent=39 // pred_fallthru
          _
      $region40: #{tpu_custom_call.1} parent=5 // pred_fallthru
        _
      %p605 = scmp.le.s32.totalorder 2, %s24
      // Predicated region
      $region61: #{tpu_custom_call.1} parent=5 // pred_check
        %p606 = pneg %p605
      $region62: #{tpu_custom_call.1} parent=5 // pred_check_branch
        %608 = sbr.rel (%p606) target = $region64
      $region63: #{tpu_custom_call.1} parent=5 // pred_region
        %s609 = ssub.s32 %s24, 2
        // Predicated region
        $region65: #{tpu_custom_call.1} parent=63 // pred_check
          %p610 = pneg %p179
        $region66: #{tpu_custom_call.1} parent=63 // pred_check_branch
          %612 = sbr.rel (%p610) target = $region68
        $region67: #{tpu_custom_call.1} parent=63 // pred_region
          %s613 = sand.u32 %s164, 1
          %s614 = scalar_lea.sflag [#allocation4], %s613
          %s615 = sand.u32 %s164, 1
          %s616 = smul.addr %s615, 16
          %s617 = scalar_lea.vmem [#allocation7], %s616
          %618 = dma.done %s614, 256
        $region68: #{tpu_custom_call.1} parent=63 // pred_fallthru
          _
        // Predicated region
        $region69: #{tpu_custom_call.1} parent=63 // pred_check
          %p619 = pneg %p207
        $region70: #{tpu_custom_call.1} parent=63 // pred_check_branch
          %621 = sbr.rel (%p619) target = $region72
        $region71: #{tpu_custom_call.1} parent=63 // pred_region
          %s622 = sand.u32 %s30, 1
          %s623 = scalar_lea.sflag [#allocation9], %s622
          %s624 = sand.u32 %s192, 1
          %s625 = smul.addr %s624, 16
          %s626 = scalar_lea.vmem [#allocation8], %s625
          %627 = dma.done %s623, 256
        $region72: #{tpu_custom_call.1} parent=63 // pred_fallthru
          _
        // Predicated region
        $region73: #{tpu_custom_call.1} parent=63 // pred_check
          %p628 = pneg %p235
        $region74: #{tpu_custom_call.1} parent=63 // pred_check_branch
          %630 = sbr.rel (%p628) target = $region76
        $region75: #{tpu_custom_call.1} parent=63 // pred_region
          %s631 = sand.u32 %s30, 1
          %s632 = scalar_lea.sflag [#allocation9], %s631
          %s633 = sand.u32 %s220, 1
          %s634 = smul.addr %s633, 16
          %s635 = scalar_lea.vmem [#allocation10], %s634
          %636 = dma.done %s632, 256
        $region76: #{tpu_custom_call.1} parent=63 // pred_fallthru
          _
      $region64: #{tpu_custom_call.1} parent=5 // pred_fallthru
        _
    $region6: #{tpu_custom_call.1} parent=1 // loop_footer
      %s28 = sadd.s32 1, %s24
    $region7: #{tpu_custom_call.1} parent=1 // loop_footer_branch
      %23 = sbr.rel target = $region3
    $region8: #{tpu_custom_call.1} parent=1 // loop_exit
      _
    %637 = vsyncpa [#allocation3], 1
    %s638 = scalar_lea.sflag [#allocation3], 1
    %639 = vsyncpa %s638, 1
    %640 = vsyncpa [#allocation6], 1
    %641 = vsyncpa [#allocation4], 1
    %s642 = scalar_lea.sflag [#allocation4], 1
    %643 = vsyncpa %s642, 1
    %644 = vsyncpa [#allocation9], 1
    %s645 = scalar_lea.sflag [#allocation9], 1
    %646 = vsyncpa %s645, 1

</llo_original>
